<compile_context>
chip_gen: v6e
topology: v6e:2x2x1
jax: 0.10.0
libtpu: 0.0.40
codegen_flags: <defaults>
</compile_context>

<pallas_src>
import functools

import jax
import jax.numpy as jnp
from jax import lax
from jax.experimental import pallas as pl
from jax.experimental.pallas import tpu as pltpu


def _round_up(x, m):
    return ((x + m - 1) // m) * m


# ----------------------------------------------------------------------------
# Weight preparation: banded ("im2col on the weight side") matrices.
# Output-column index convention:  c = ry * (W*Cout) + w * Cout + co, so the
# (N*H/2, 2*W*Cout) kernel output reshapes row-major straight to (N,H,W,Cout).
# ----------------------------------------------------------------------------
def _band_matrices_same_conv(w_hwio, w_out, wp):
    """Banded matrices for a stride-1 'same' conv (K == 3).

    w_hwio : (K, K, Cin, Cout) conv weight.
    Returns (2, 2*wp*Cin, 2*w_out*Cout); entry [m, (s, j, ci), (ry, w, co)]
    equals w_hwio[s + 2*m - ry, j - w, ci, co] when the tap indices are valid.
    """
    K, _, cin, cout = w_hwio.shape
    assert K == 3, "banded construction below is specialized to K == 3"
    j = jnp.arange(wp)[None, :, None]
    w = jnp.arange(w_out)[None, None, :]
    kw = jnp.arange(K)[:, None, None]
    band = (j == w + kw).astype(w_hwio.dtype)               # (K, wp, w_out)
    mats = []
    for shift in (0, 2):
        m = jnp.zeros((2, wp, cin, 2, w_out, cout), w_hwio.dtype)
        for s in range(2):
            for ry in range(2):
                kh = s + shift - ry
                if 0 <= kh < K:
                    contrib = jnp.einsum(
                        "kjw,kio->jiwo", band, w_hwio[kh],
                        precision=lax.Precision.HIGHEST)    # (wp,Cin,w_out,Cout)
                    m = m.at[s, :, :, ry, :, :].add(contrib)
        mats.append(m.reshape(2 * wp * cin, 2 * w_out * cout))
    return jnp.stack(mats, axis=0)


def _band_matrices_transposed_conv(wt_iokk, w_out, pp):
    """Banded matrices for ConvTranspose2d(K=3, stride=2, padding=1,
    output_padding=1) via sub-pixel phase decomposition (no zero-dilation).

    wt_iokk : (Cin, Cout, K, K) PyTorch-layout transposed-conv weight.
    pp      : padded t-input width (Wt + 1).
    Returns (2, pp*Cin, 2*w_out*Cout).
    """
    cin, cout, K, _ = wt_iokk.shape
    assert K == 3, "phase decomposition below is specialized to K == 3"
    # equivalent forward-conv weight: wf[kh,kw,ci,co] = wt[ci,co,K-1-kh,K-1-kw]
    wf = jnp.flip(wt_iokk, axis=(2, 3)).transpose(2, 3, 0, 1)   # (K,K,Cin,Cout)
    p = jnp.arange(pp)[None, :, None]
    ox = jnp.arange(w_out)[None, None, :]
    kw = jnp.arange(K)[:, None, None]
    band = (2 * p + 1 - ox == kw).astype(wt_iokk.dtype)         # (K, pp, w_out)
    mats = []
    for shift in (1, 3):   # t row r -> kh = 1 - ry ; t row r+1 -> kh = 3 - ry
        m = jnp.zeros((pp, cin, 2, w_out, cout), wt_iokk.dtype)
        for ry in range(2):
            kh = shift - ry
            if 0 <= kh < K:
                contrib = jnp.einsum(
                    "kpq,kio->piqo", band, wf[kh],
                    precision=lax.Precision.HIGHEST)            # (pp,Cin,w_out,Cout)
                m = m.at[:, :, ry, :, :].add(contrib)
        mats.append(m.reshape(pp * cin, 2 * w_out * cout))
    return jnp.stack(mats, axis=0)


def prepare_banded_weights(params, W):
    """Build the two fused GEMM weight matrices (hoisted out of the per-call
    forward so repeated inference calls don't rebuild them)."""
    w_bu, b_bu = params["w_bu"], params["b_bu"]        # (K,K,Cin,Cout), (Cout,)
    w_lat, b_lat = params["w_lat"], params["b_lat"]    # (K,K,Cout,Cout), (Cout,)
    w_td, b_td = params["w_td"], params["b_td"]        # (2*Cout,Cout,K,K), (Cout,)
    K = w_bu.shape[0]
    assert K == 3
    pad = (K - 1) // 2
    Wp = W + 2 * pad
    Wt = W // 2

    wb = _band_matrices_same_conv(w_bu, W, Wp)             # (2, 2*Wp*Cin, lanes)
    wl = _band_matrices_same_conv(w_lat, W, Wp)            # (2, 2*Wp*Cout, lanes)
    wt = _band_matrices_transposed_conv(w_td, W, Wt + 1)   # (2, (Wt+1)*Ctd, lanes)

    bias_b = jnp.tile(b_bu, 2 * W)[None, :]                # (1, lanes)
    bias_lt = jnp.tile(b_lat + b_td, 2 * W)[None, :]       # (1, lanes)

    # One (K_cat, lanes) matrix per GEMM; bias folded in as the last row
    # (matched by a constant-1 lane appended to the activations).
    wb_mat = jnp.concatenate([wb[0], wb[1], bias_b], axis=0)
    wlt_mat = jnp.concatenate([wl[0], wl[1], wt[0], wt[1], bias_lt], axis=0)

    def pad_k(m):  # pad contraction depth to a packing-friendly multiple of 16
        k = m.shape[0]
        return jnp.pad(m, ((0, _round_up(k, 16) - k), (0, 0)))

    return {"wb": pad_k(wb_mat), "wlt": pad_k(wlt_mat)}


# ----------------------------------------------------------------------------
# Fused Pallas kernel: 2 lane-dense GEMMs + combine + single unmasked store.
# ----------------------------------------------------------------------------
def _blt_fused_kernel(xb_ref, xlt_ref, wb_ref, wlt_ref, o_ref, *, mode):
    # bottom-up branch: one GEMM (bias folded into last contraction row)
    b = jnp.dot(xb_ref[...], wb_ref[...], preferred_element_type=jnp.float32)
    # lateral + top-down: fused into one GEMM over the concatenated contraction
    lt = jnp.dot(xlt_ref[...], wlt_ref[...], preferred_element_type=jnp.float32)
    if mode == "additive":
        out = b + lt
    else:                                                  # multiplicative
        out = b * (1.0 + lt)
    o_ref[...] = out.astype(o_ref.dtype)


# ----------------------------------------------------------------------------
# BLT_Conv forward (Pallas), NCHW in / NCHW out like the PyTorch module.
# ----------------------------------------------------------------------------
@functools.partial(jax.jit, static_argnames=("lt_interaction", "use_bf16"))
def blt_conv_forward(prepared, b_input, l_input, t_input, *,
                     lt_interaction, use_bf16=False):
    if lt_interaction not in ("additive", "multiplicative"):
        raise ValueError("LT_interaction must be additive or multiplicative")
    # TODO(synk): only the full path (both l_input and t_input) is implemented.

    N, Cin, H, W = b_input.shape
    Cout = l_input.shape[1]
    Ctd, Ht, Wt = t_input.shape[1], t_input.shape[2], t_input.shape[3]
    assert H % 2 == 0 and W % 2 == 0 and Ht * 2 == H and Wt * 2 == W

    pad = 1                               # kernel_size == 3, 'same' padding
    Hp, Wp = H + 2 * pad, W + 2 * pad
    rows = H // 2                         # one GEMM row covers 2 output rows
    lanes = 2 * W * Cout                  # lane-dense output layout
    total = N * rows
    cdt = jnp.bfloat16 if use_bf16 else jnp.float32

    # --- activation prep: fold each output row's full receptive field into
    #     its own lane vector (rows self-contained -> batch folds into M).
    def prep_same(x_nchw, c):
        x = jnp.transpose(x_nchw, (0, 2, 3, 1))
        x = jnp.pad(x, ((0, 0), (pad, pad), (pad, pad), (0, 0)))
        x = x.reshape(N, Hp // 2, 2 * Wp * c)              # padded row pairs
        x = jnp.concatenate([x[:, :-1, :], x[:, 1:, :]], axis=-1)
        return x.reshape(total, 4 * Wp * c)

    xb = prep_same(b_input, Cin)
    xl = prep_same(l_input, Cout)

    xt = jnp.transpose(t_input, (0, 2, 3, 1))              # (N, Ht, Wt, Ctd)
    xt = jnp.pad(xt, ((0, 0), (0, 1), (0, 1), (0, 0)))     # high-side halo only
    xt = xt.reshape(N, Ht + 1, (Wt + 1) * Ctd)
    xt = jnp.concatenate([xt[:, :-1, :], xt[:, 1:, :]], axis=-1)
    xt = xt.reshape(total, 2 * (Wt + 1) * Ctd)

    ones = jnp.ones((total, 1), b_input.dtype)             # bias lane
    xb1 = jnp.concatenate([xb, ones], axis=-1)
    xlt1 = jnp.concatenate([xl, xt, ones], axis=-1)

    wb_mat = prepared["wb"].astype(cdt)
    wlt_mat = prepared["wlt"].astype(cdt)
    Kb, Klt = wb_mat.shape[0], wlt_mat.shape[0]
    assert wb_mat.shape[1] == lanes and wlt_mat.shape[1] == lanes
    assert Kb >= xb1.shape[1] and Klt >= xlt1.shape[1]

    # --- M tiling: batch folded into the GEMM M dimension; keep >= 2 grid
    #     steps when possible so both v7x TensorCores get work.
    tile_m = 128
    if total <= tile_m:
        tile_m = min(_round_up(total, 8),
                     max(8, _round_up((total + 1) // 2, 8)))
    total_pad = _round_up(total, tile_m)
    num_tiles = total_pad // tile_m

    def pad_mk(x, k_target):
        m, k = x.shape
        return jnp.pad(x, ((0, total_pad - m), (0, k_target - k))).astype(cdt)

    xb1 = pad_mk(xb1, Kb)
    xlt1 = pad_mk(xlt1, Klt)

    # --- explicit VMEM budget (double-buffered tiles + weight blocks).
    bpe = 2 if use_bf16 else 4
    blk_bytes = (2 * tile_m * (Kb + Klt) * bpe             # activation tiles
                 + 2 * tile_m * lanes * 4                  # output tiles
                 + 2 * (Kb + Klt) * lanes * bpe)           # weight blocks
    vmem_limit = int(min(64 * 2**20, max(32 * 2**20, 2 * blk_bytes)))

    kern = functools.partial(_blt_fused_kernel, mode=lt_interaction)
    out_flat = pl.pallas_call(
        kern,
        out_shape=jax.ShapeDtypeStruct((total_pad, lanes), b_input.dtype),
        grid=(num_tiles,),
        in_specs=[
            pl.BlockSpec((tile_m, Kb), lambda m: (m, 0)),
            pl.BlockSpec((tile_m, Klt), lambda m: (m, 0)),
            pl.BlockSpec((Kb, lanes), lambda m: (0, 0)),    # grid-invariant
            pl.BlockSpec((Klt, lanes), lambda m: (0, 0)),   # grid-invariant
        ],
        out_specs=pl.BlockSpec((tile_m, lanes), lambda m: (m, 0)),
        compiler_params=pltpu.CompilerParams(
            dimension_semantics=("parallel",),
            vmem_limit_bytes=vmem_limit),
    )(xb1, xlt1, wb_mat, wlt_mat)

    # (total, 2*W*Cout) row-major == (N, H, W, Cout); reshape is free.
    out_nhwc = out_flat[:total].reshape(N, H, W, Cout)
    return jnp.transpose(out_nhwc, (0, 3, 1, 2))           # NCHW, like PyTorch


# ----------------------------------------------------------------------------
# Reference (pure lax) for correctness sanity check
# ----------------------------------------------------------------------------
def _ref_forward(params, b_in, l_in, t_in, mode):
    dn = ("NHWC", "HWIO", "NHWC")
    to_nhwc = lambda x: jnp.transpose(x, (0, 2, 3, 1))
    to_nchw = lambda x: jnp.transpose(x, (0, 3, 1, 2))

    b = lax.conv_general_dilated(to_nhwc(b_in), params["w_bu"], (1, 1),
                                 "SAME", dimension_numbers=dn) + params["b_bu"]
    l = lax.conv_general_dilated(to_nhwc(l_in), params["w_lat"], (1, 1),
                                 "SAME", dimension_numbers=dn) + params["b_lat"]
    K = params["w_td"].shape[2]
    pad_lo, pad_hi = K - 1 - 1, K - 1 - 1 + 1
    w_td = jnp.flip(params["w_td"], axis=(2, 3)).transpose(2, 3, 0, 1)
    t = lax.conv_general_dilated(to_nhwc(t_in), w_td, (1, 1),
                                 [(pad_lo, pad_hi), (pad_lo, pad_hi)],
                                 lhs_dilation=(2, 2),
                                 dimension_numbers=dn) + params["b_td"]
    if mode == "additive":
        out = b + l + t
    else:
        out = b * (1.0 + l + t)
    return to_nchw(out)


# ----------------------------------------------------------------------------
if __name__ == "__main__":
    key = jax.random.PRNGKey(0)
    N, Cin, Cout, K, HW = 2, 4, 8, 3, 16

    ks = jax.random.split(key, 9)
    params = {
        # bottom_up: Conv2d(Cin, Cout, K) -> HWIO
        "w_bu": 0.1 * jax.random.normal(ks[0], (K, K, Cin, Cout), jnp.float32),
        "b_bu": 0.1 * jax.random.normal(ks[1], (Cout,), jnp.float32),
        # lateral: Conv2d(Cout, Cout, K) -> HWIO
        "w_lat": 0.1 * jax.random.normal(ks[2], (K, K, Cout, Cout), jnp.float32),
        "b_lat": 0.1 * jax.random.normal(ks[3], (Cout,), jnp.float32),
        # top_down: ConvTranspose2d(2*Cout, Cout, K, stride=2, padding=1,
        #                           output_padding=1), PyTorch layout (I,O,K,K)
        "w_td": 0.1 * jax.random.normal(ks[4], (2 * Cout, Cout, K, K), jnp.float32),
        "b_td": 0.1 * jax.random.normal(ks[5], (Cout,), jnp.float32),
    }

    # Inputs (NCHW, matching the PyTorch module's calling convention)
    b_input = jax.random.normal(ks[6], (N, Cin, HW, HW), jnp.float32)
    l_input = jax.random.normal(ks[7], (N, Cout, HW, HW), jnp.float32)
    t_input = jax.random.normal(ks[8], (N, 2 * Cout, HW // 2, HW // 2),
                                jnp.float32)

    # Banded GEMM weights built once, reused across forwards.
    prepared = prepare_banded_weights(params, HW)

    out_add = jax.block_until_ready(
        blt_conv_forward(prepared, b_input, l_input, t_input,
                         lt_interaction="additive"))
    out_mul = jax.block_until_ready(
        blt_conv_forward(prepared, b_input, l_input, t_input,
                         lt_interaction="multiplicative"))

    ref_add = _ref_forward(params, b_input, l_input, t_input, "additive")
    ref_mul = _ref_forward(params, b_input, l_input, t_input, "multiplicative")

    assert out_add.shape == (N, Cout, HW, HW)
    assert out_mul.shape == (N, Cout, HW, HW)
    assert jnp.allclose(out_add, ref_add, atol=5e-4, rtol=5e-4)
    assert jnp.allclose(out_mul, ref_mul, atol=5e-4, rtol=5e-4)

    # bf16 MXU-operand throughput mode (f32 accumulation) — looser agreement.
    out_bf16 = jax.block_until_ready(
        blt_conv_forward(prepared, b_input, l_input, t_input,
                         lt_interaction="additive", use_bf16=True))
    assert out_bf16.shape == (N, Cout, HW, HW)
    assert bool(jnp.all(jnp.isfinite(out_bf16)))
    assert jnp.allclose(out_bf16, ref_add, atol=5e-2, rtol=5e-2)

    print("KERNEL_OK")
</pallas_src>

<mosaic_0001>
module attributes {stable_mosaic.version = 11 : i64} {
  func.func @_blt_fused_kernel(%arg0: i32, %arg1: memref<8x304xf32, #tpu.memory_space<vmem>>, %arg2: memref<8x880xf32, #tpu.memory_space<vmem>>, %arg3: memref<304x256xf32, #tpu.memory_space<vmem>>, %arg4: memref<880x256xf32, #tpu.memory_space<vmem>>, %arg5: memref<8x256xf32, #tpu.memory_space<vmem>>) attributes {dimension_semantics = [#tpu.dimension_semantics<parallel>], iteration_bounds = array<i64: 2>, scalar_prefetch = 0 : i64, scratch_operands = 0 : i64, tpu.core_type = #tpu.core_type<tc>, window_params = [{transform_indices = @transform_0, window_bounds = array<i64: 8, 304>}, {transform_indices = @transform_1, window_bounds = array<i64: 8, 880>}, {pipeline_mode = #tpu.pipeline_mode<synchronous>, transform_indices = @transform_2, window_bounds = array<i64: 304, 256>}, {pipeline_mode = #tpu.pipeline_mode<synchronous>, transform_indices = @transform_3, window_bounds = array<i64: 880, 256>}, {transform_indices = @transform_4, window_bounds = array<i64: 8, 256>}]} {
    %c0 = arith.constant 0 : index
    %c0_0 = arith.constant 0 : index
    %0 = vector.load %arg1[%c0, %c0_0] : memref<8x304xf32, #tpu.memory_space<vmem>>, vector<8x304xf32>
    %c0_1 = arith.constant 0 : index
    %c0_2 = arith.constant 0 : index
    %1 = vector.load %arg3[%c0_1, %c0_2] : memref<304x256xf32, #tpu.memory_space<vmem>>, vector<304x256xf32>
    %cst = arith.constant dense<0.000000e+00> : vector<8x256xf32>
    %2 = tpu.matmul %0, %1, %cst {dimension_numbers = #tpu.dot_dimension_numbers<[1], [0], [0], [1], [0, 0, 1, 1], [], []>} : vector<8x304xf32>, vector<304x256xf32>, vector<8x256xf32> -> vector<8x256xf32>
    %c0_3 = arith.constant 0 : index
    %c0_4 = arith.constant 0 : index
    %3 = vector.load %arg2[%c0_3, %c0_4] : memref<8x880xf32, #tpu.memory_space<vmem>>, vector<8x880xf32>
    %c0_5 = arith.constant 0 : index
    %c0_6 = arith.constant 0 : index
    %4 = vector.load %arg4[%c0_5, %c0_6] : memref<880x256xf32, #tpu.memory_space<vmem>>, vector<880x256xf32>
    %cst_7 = arith.constant dense<0.000000e+00> : vector<8x256xf32>
    %5 = tpu.matmul %3, %4, %cst_7 {dimension_numbers = #tpu.dot_dimension_numbers<[1], [0], [0], [1], [0, 0, 1, 1], [], []>} : vector<8x880xf32>, vector<880x256xf32>, vector<8x256xf32> -> vector<8x256xf32>
    %6 = arith.addf %2, %5 : vector<8x256xf32>
    %c0_8 = arith.constant 0 : index
    %c0_9 = arith.constant 0 : index
    %7 = vector.load %arg5[%c0_8, %c0_9] : memref<8x256xf32, #tpu.memory_space<vmem>>, vector<8x256xf32>
    tpu.vector_store %arg5[%c0_8, %c0_9], %6 {strides = array<i32>} : memref<8x256xf32, #tpu.memory_space<vmem>>, vector<8x256xf32>,
    return
  }
  func.func @transform_0(%arg0: i32) -> (i32, i32) {
    %c0_i32 = arith.constant 0 : i32
    %c0_i32_0 = arith.constant 0 : i32
    return %arg0, %c0_i32 : i32, i32
  }
  func.func @transform_1(%arg0: i32) -> (i32, i32) {
    %c0_i32 = arith.constant 0 : i32
    %c0_i32_0 = arith.constant 0 : i32
    return %arg0, %c0_i32 : i32, i32
  }
  func.func @transform_2(%arg0: i32) -> (i32, i32) {
    %c0_i32 = arith.constant 0 : i32
    %c0_i32_0 = arith.constant 0 : i32
    %c0_i32_1 = arith.constant 0 : i32
    return %c0_i32, %c0_i32_0 : i32, i32
  }
  func.func @transform_3(%arg0: i32) -> (i32, i32) {
    %c0_i32 = arith.constant 0 : i32
    %c0_i32_0 = arith.constant 0 : i32
    %c0_i32_1 = arith.constant 0 : i32
    return %c0_i32, %c0_i32_0 : i32, i32
  }
  func.func @transform_4(%arg0: i32) -> (i32, i32) {
    %c0_i32 = arith.constant 0 : i32
    %c0_i32_0 = arith.constant 0 : i32
    return %arg0, %c0_i32 : i32, i32
  }
}

</mosaic_0001>

<llo_original>
// kernel: blt_conv_forward.1
$region0: #{blt_conv_forward.1}
  #allocation0 [shape = 'u32[]', space=smem, size = 0x4, offset = 0x4, fixed_abs, tag = 'smem constant byte address 0x4 - core index']
  #allocation1 [shape = 'u32[144,128]{1,0:T(1,128)}', space=vmem, size = 0x12000, scoped, tag = 'internal scratch']
  %s0 = inlined_call_operand.vmem [shape: f32[16,304], index: 0, kind: input, shape index: {}]
  %s1 = inlined_call_operand.vmem [shape: f32[16,880], index: 1, kind: input, shape index: {}]
  %s2 = inlined_call_operand.vmem [shape: f32[304,256], index: 2, kind: input, shape index: {}]
  %s3 = inlined_call_operand.vmem [shape: f32[880,256], index: 3, kind: input, shape index: {}]
  %s4 = inlined_call_operand.vmem [shape: f32[16,256], index: 4, kind: output, shape index: {}]
  %s5 = sld [smem:[#allocation0]]
  $region49: #{blt_conv_forward.1} parent=0
    _
  %s7 = ssub.s32 1, %s5
  %s8 = scalar_select 0, %s7, %s5
  loop: start=0, step=1, limit=4
  $region2: #{blt_conv_forward.1} parent=0 // loop_pre_header
    _
  $region3: #{blt_conv_forward.1} parent=0 // loop_header
    %s10 = sphi 0, %s14
    %p11 = scmp.ge.s32.totalorder %s10, 4
    %s20 = sphi 0, %s22
    %s23 = sphi 0, %s20
    %s24 = sphi 0, %s23
    %s40 = sphi 0, %s24
    %s46 = sphi 0, %s48
    %s49 = sphi 0, %s46
    %s50 = sphi 0, %s49
    %s66 = sphi 0, %s50
    %s70 = sphi 0, %s70
    %s72 = sphi 0, %s70
    %s73 = sphi 0, %s72
    %s87 = sphi 0, %s73
    %s91 = sphi 0, %s91
    %s93 = sphi 0, %s91
    %s94 = sphi 0, %s93
    %s108 = sphi 0, %s94
    %s114 = sphi 0, %s116
    %s117 = sphi 0, %s114
    %s118 = sphi 0, %s117
    %s134 = sphi 0, %s118
  $region4: #{blt_conv_forward.1} parent=0 // loop_header_branch
    %13 = sbr.rel (%p11) target = $region8
  $region5: #{blt_conv_forward.1} parent=0 // loop_body
    %s15 = ssub.s32 %s10, 1
    %s16 = ssub.s32 %s10, 2
    %s17 = sadd.s32 %s10, 1
    %s18 = ssub.s32 %s10, %s17
    %p19 = scmp.eq.s32.totalorder %s18, 0
    %s21 = sadd.s32 %s20, 1
    %s22 = scalar_select %p19, %s20, %s21
    %p25 = pneg %p19
    %p26 = scmp.eq.s32.totalorder %s10, 1
    %p27 = por %p25, %p26
    %p28 = scmp.ne.s32.totalorder %s20, %s23
    %p29 = scmp.eq.s32.totalorder %s10, 0
    %p30 = por %p28, %p29
    %p31 = scmp.ne.s32.totalorder %s20, %s23
    %p32 = scmp.eq.s32.totalorder %s15, 1
    %p33 = por %p31, %p32
    %p34 = scmp.ne.s32.totalorder %s23, %s24
    %p35 = scmp.eq.s32.totalorder %s15, 0
    %p36 = por %p34, %p35
    %p37 = scmp.ne.s32.totalorder %s23, %s24
    %p38 = scmp.eq.s32.totalorder %s16, 1
    %p39 = por %p37, %p38
    %p41 = scmp.ne.s32.totalorder %s24, %s40
    %p42 = scmp.eq.s32.totalorder %s16, 0
    %p43 = por %p41, %p42
    %s44 = ssub.s32 %s10, %s17
    %p45 = scmp.eq.s32.totalorder %s44, 0
    %s47 = sadd.s32 %s46, 1
    %s48 = scalar_select %p45, %s46, %s47
    %p51 = pneg %p45
    %p52 = scmp.eq.s32.totalorder %s10, 1
    %p53 = por %p51, %p52
    %p54 = scmp.ne.s32.totalorder %s46, %s49
    %p55 = scmp.eq.s32.totalorder %s10, 0
    %p56 = por %p54, %p55
    %p57 = scmp.ne.s32.totalorder %s46, %s49
    %p58 = scmp.eq.s32.totalorder %s15, 1
    %p59 = por %p57, %p58
    %p60 = scmp.ne.s32.totalorder %s49, %s50
    %p61 = scmp.eq.s32.totalorder %s15, 0
    %p62 = por %p60, %p61
    %p63 = scmp.ne.s32.totalorder %s49, %s50
    %p64 = scmp.eq.s32.totalorder %s16, 1
    %p65 = por %p63, %p64
    %p67 = scmp.ne.s32.totalorder %s50, %s66
    %p68 = scmp.eq.s32.totalorder %s16, 0
    %p69 = por %p67, %p68
    %s71 = sadd.s32 %s70, 1
    %p74 = scmp.eq.s32.totalorder %s10, 1
    %p75 = scmp.ne.s32.totalorder %s70, %s72
    %p76 = scmp.eq.s32.totalorder %s10, 0
    %p77 = por %p75, %p76
    %p78 = scmp.ne.s32.totalorder %s70, %s72
    %p79 = scmp.eq.s32.totalorder %s15, 1
    %p80 = por %p78, %p79
    %p81 = scmp.ne.s32.totalorder %s72, %s73
    %p82 = scmp.eq.s32.totalorder %s15, 0
    %p83 = por %p81, %p82
    %p84 = scmp.ne.s32.totalorder %s72, %s73
    %p85 = scmp.eq.s32.totalorder %s16, 1
    %p86 = por %p84, %p85
    %p88 = scmp.ne.s32.totalorder %s73, %s87
    %p89 = scmp.eq.s32.totalorder %s16, 0
    %p90 = por %p88, %p89
    %s92 = sadd.s32 %s91, 1
    %p95 = scmp.eq.s32.totalorder %s10, 1
    %p96 = scmp.ne.s32.totalorder %s91, %s93
    %p97 = scmp.eq.s32.totalorder %s10, 0
    %p98 = por %p96, %p97
    %p99 = scmp.ne.s32.totalorder %s91, %s93
    %p100 = scmp.eq.s32.totalorder %s15, 1
    %p101 = por %p99, %p100
    %p102 = scmp.ne.s32.totalorder %s93, %s94
    %p103 = scmp.eq.s32.totalorder %s15, 0
    %p104 = por %p102, %p103
    %p105 = scmp.ne.s32.totalorder %s93, %s94
    %p106 = scmp.eq.s32.totalorder %s16, 1
    %p107 = por %p105, %p106
    %p109 = scmp.ne.s32.totalorder %s94, %s108
    %p110 = scmp.eq.s32.totalorder %s16, 0
    %p111 = por %p109, %p110
    %s112 = ssub.s32 %s10, %s17
    %p113 = scmp.eq.s32.totalorder %s112, 0
    %s115 = sadd.s32 %s114, 1
    %s116 = scalar_select %p113, %s114, %s115
    %p119 = pneg %p113
    %p120 = scmp.eq.s32.totalorder %s10, 1
    %p121 = por %p119, %p120
    %p122 = scmp.ne.s32.totalorder %s114, %s117
    %p123 = scmp.eq.s32.totalorder %s10, 0
    %p124 = por %p122, %p123
    %p125 = scmp.ne.s32.totalorder %s114, %s117
    %p126 = scmp.eq.s32.totalorder %s15, 1
    %p127 = por %p125, %p126
    %p128 = scmp.ne.s32.totalorder %s117, %s118
    %p129 = scmp.eq.s32.totalorder %s15, 0
    %p130 = por %p128, %p129
    %p131 = scmp.ne.s32.totalorder %s117, %s118
    %p132 = scmp.eq.s32.totalorder %s16, 1
    %p133 = por %p131, %p132
    %p135 = scmp.ne.s32.totalorder %s118, %s134
    %p136 = scmp.eq.s32.totalorder %s16, 0
    %p137 = por %p135, %p136
    %p138 = scmp.le.s32.totalorder 1, %s10
    %p139 = scmp.lt.s32.totalorder %s10, 3
    %p140 = pnand %p138, %p139
    %p141 = pneg %p140
    // Predicated region
    $region9: #{blt_conv_forward.1} parent=5 // pred_check
      _
    $region10: #{blt_conv_forward.1} parent=5 // pred_check_branch
      %143 = sbr.rel (%p140) target = $region12
    $region11: #{blt_conv_forward.1} parent=5 // pred_region
      %s144 = ssub.s32 %s10, 1
      // Predicated region
      $region13: #{blt_conv_forward.1} parent=11 // pred_check
        %p145 = pneg %p83
      $region14: #{blt_conv_forward.1} parent=11 // pred_check_branch
        %147 = sbr.rel (%p145) target = $region16
      $region15: #{blt_conv_forward.1} parent=11 // pred_region
        _
      $region16: #{blt_conv_forward.1} parent=11 // pred_fallthru
        _
      // Predicated region
      $region17: #{blt_conv_forward.1} parent=11 // pred_check
        %p148 = pneg %p104
      $region18: #{blt_conv_forward.1} parent=11 // pred_check_branch
        %150 = sbr.rel (%p148) target = $region20
      $region19: #{blt_conv_forward.1} parent=11 // pred_region
        _
      $region20: #{blt_conv_forward.1} parent=11 // pred_fallthru
        _
    $region12: #{blt_conv_forward.1} parent=5 // pred_fallthru
      _
    %p151 = scmp.lt.s32.totalorder %s10, 2
    // Predicated region
    $region21: #{blt_conv_forward.1} parent=5 // pred_check
      %p152 = pneg %p151
    $region22: #{blt_conv_forward.1} parent=5 // pred_check_branch
      %154 = sbr.rel (%p152) target = $region24
    $region23: #{blt_conv_forward.1} parent=5 // pred_region
      // Predicated region
      $region25: #{blt_conv_forward.1} parent=23 // pred_check
        %p155 = pneg %p30
      $region26: #{blt_conv_forward.1} parent=23 // pred_check_branch
        %157 = sbr.rel (%p155) target = $region28
      $region27: #{blt_conv_forward.1} parent=23 // pred_region
        %p158 = scmp.lt.s32.totalorder %s10, 1
        %s159 = scalar_select %p158, %s10, 1
        %s160 = smul.addr %s159, 3
        %s161 = smul.addr %s160, 8
        %s162 = scalar_lea.vmem %s0, %s161
      $region28: #{blt_conv_forward.1} parent=23 // pred_fallthru
        _
      // Predicated region
      $region29: #{blt_conv_forward.1} parent=23 // pred_check
        %p163 = pneg %p56
      $region30: #{blt_conv_forward.1} parent=23 // pred_check_branch
        %165 = sbr.rel (%p163) target = $region32
      $region31: #{blt_conv_forward.1} parent=23 // pred_region
        %p166 = scmp.lt.s32.totalorder %s10, 1
        %s167 = scalar_select %p166, %s10, 1
        %s168 = smul.addr %s167, 7
        %s169 = smul.addr %s168, 8
        %s170 = scalar_lea.vmem %s1, %s169
      $region32: #{blt_conv_forward.1} parent=23 // pred_fallthru
        _
    $region24: #{blt_conv_forward.1} parent=5 // pred_fallthru
      _
    %p171 = scmp.le.s32.totalorder 1, %s10
    %p172 = scmp.lt.s32.totalorder %s10, 3
    %p173 = pnand %p171, %p172
    %p174 = pneg %p173
    // Predicated region
    $region33: #{blt_conv_forward.1} parent=5 // pred_check
      _
    $region34: #{blt_conv_forward.1} parent=5 // pred_check_branch
      %176 = sbr.rel (%p173) target = $region36
    $region35: #{blt_conv_forward.1} parent=5 // pred_region
      %s177 = ssub.s32 %s10, 1
      %p178 = scmp.lt.s32.totalorder %s15, 1
      %s179 = scalar_select %p178, %s15, 1
      %s180 = smul.addr %s179, 3
      %s181 = smul.addr %s180, 8
      %s182 = scalar_lea.vmem %s0, %s181
      %p183 = pneg %p36
      %p184 = pneg %p33
      %p185 = scmp.lt.s32.totalorder %s15, 1
      %s186 = scalar_select %p185, %s15, 1
      %s187 = smul.addr %s186, 7
      %s188 = smul.addr %s187, 8
      %s189 = scalar_lea.vmem %s1, %s188
      %p190 = pneg %p62
      %p191 = pneg %p59
      %p192 = pneg %p83
      %p193 = pneg %p80
      %p194 = pneg %p104
      %p195 = pneg %p101
      %p196 = pneg %p130
      %p197 = pneg %p127
      %p198 = scmp.lt.s32.totalorder %s15, 1
      %s199 = scalar_select %p198, %s15, 1
      %s200 = smul.addr %s199, 2
      %s201 = smul.addr %s200, 8
      %s202 = scalar_lea.vmem %s4, %s201
      %p203 = scmp.lt.s32.totalorder %s15, 1
      %s204 = scalar_select %p203, %s15, 1
      %s205 = smul.addr %s204, 3
      %s206 = smul.addr %s205, 8
      %s207 = scalar_lea.vmem %s0, %s206
      %p208 = scmp.lt.s32.totalorder %s15, 1
      %s209 = scalar_select %p208, %s15, 1
      %s210 = smul.addr %s209, 7
      %s211 = smul.addr %s210, 8
      %s212 = scalar_lea.vmem %s1, %s211
      %p213 = scmp.lt.s32.totalorder %s15, 1
      %s214 = scalar_select %p213, %s15, 1
      %s215 = smul.addr %s214, 2
      %s216 = smul.addr %s215, 8
      %s217 = scalar_lea.vmem %s4, %s216
      %v218 = vld [vmem:[%s207] sm:$0xff]
      %v219 = vld [vmem:[%s207 + $0x8] sm:$0xff]
      %v220 = vld [vmem:[%s207 + $0x10] sm:$0xff]
      %v221 = vld [vmem:[%s2] sm:$0xff]
      %v222 = vld [vmem:[%s2 + $0x8] sm:$0xff]
      %v223 = vld [vmem:[%s2 + $0x10] sm:$0xff]
      %v224 = vld [vmem:[%s2 + $0x18] sm:$0xff]
      %v225 = vld [vmem:[%s2 + $0x20] sm:$0xff]
      %v226 = vld [vmem:[%s2 + $0x28] sm:$0xff]
      %v227 = vld [vmem:[%s2 + $0x30] sm:$0xff]
      %v228 = vld [vmem:[%s2 + $0x38] sm:$0xff]
      %v229 = vld [vmem:[%s2 + $0x40] sm:$0xff]
      %v230 = vld [vmem:[%s2 + $0x48] sm:$0xff]
      %v231 = vld [vmem:[%s2 + $0x50] sm:$0xff]
      %v232 = vld [vmem:[%s2 + $0x58] sm:$0xff]
      %v233 = vld [vmem:[%s2 + $0x60] sm:$0xff]
      %v234 = vld [vmem:[%s2 + $0x68] sm:$0xff]
      %v235 = vld [vmem:[%s2 + $0x70] sm:$0xff]
      %v236 = vld [vmem:[%s2 + $0x78] sm:$0xff]
      %v237 = vld [vmem:[%s2 + $0x80] sm:$0xff]
      %v238 = vld [vmem:[%s2 + $0x88] sm:$0xff]
      %v239 = vld [vmem:[%s2 + $0x90] sm:$0xff]
      %v240 = vld [vmem:[%s2 + $0x98] sm:$0xff]
      %v241 = vld [vmem:[%s2 + $0xa0] sm:$0xff]
      %v242 = vld [vmem:[%s2 + $0xa8] sm:$0xff]
      %v243 = vld [vmem:[%s2 + $0xb0] sm:$0xff]
      %v244 = vld [vmem:[%s2 + $0xb8] sm:$0xff]
      %v245 = vld [vmem:[%s2 + $0xc0] sm:$0xff]
      %v246 = vld [vmem:[%s2 + $0xc8] sm:$0xff]
      %v247 = vld [vmem:[%s2 + $0xd0] sm:$0xff]
      %v248 = vld [vmem:[%s2 + $0xd8] sm:$0xff]
      %v249 = vld [vmem:[%s2 + $0xe0] sm:$0xff]
      %v250 = vld [vmem:[%s2 + $0xe8] sm:$0xff]
      %v251 = vld [vmem:[%s2 + $0xf0] sm:$0xff]
      %v252 = vld [vmem:[%s2 + $0xf8] sm:$0xff]
      %v253 = vld [vmem:[%s2 + $0x100] sm:$0xff]
      %v254 = vld [vmem:[%s2 + $0x108] sm:$0xff]
      %v255 = vld [vmem:[%s2 + $0x110] sm:$0xff]
      %v256 = vld [vmem:[%s2 + $0x118] sm:$0xff]
      %v257 = vld [vmem:[%s2 + $0x120] sm:$0xff]
      %v258 = vld [vmem:[%s2 + $0x128] sm:$0xff]
      %v259 = vld [vmem:[%s2 + $0x130] sm:$0xff]
      %v260 = vld [vmem:[%s2 + $0x138] sm:$0xff]
      %v261 = vld [vmem:[%s2 + $0x140] sm:$0xff]
      %v262 = vld [vmem:[%s2 + $0x148] sm:$0xff]
      %v263 = vld [vmem:[%s2 + $0x150] sm:$0xff]
      %v264 = vld [vmem:[%s2 + $0x158] sm:$0xff]
      %v265 = vld [vmem:[%s2 + $0x160] sm:$0xff]
      %v266 = vld [vmem:[%s2 + $0x168] sm:$0xff]
      %v267 = vld [vmem:[%s2 + $0x170] sm:$0xff]
      %v268 = vld [vmem:[%s2 + $0x178] sm:$0xff]
      %v269 = vld [vmem:[%s2 + $0x180] sm:$0xff]
      %v270 = vld [vmem:[%s2 + $0x188] sm:$0xff]
      %v271 = vld [vmem:[%s2 + $0x190] sm:$0xff]
      %v272 = vld [vmem:[%s2 + $0x198] sm:$0xff]
      %v273 = vld [vmem:[%s2 + $0x1a0] sm:$0xff]
      %v274 = vld [vmem:[%s2 + $0x1a8] sm:$0xff]
      %v275 = vld [vmem:[%s2 + $0x1b0] sm:$0xff]
      %v276 = vld [vmem:[%s2 + $0x1b8] sm:$0xff]
      %v277 = vld [vmem:[%s2 + $0x1c0] sm:$0xff]
      %v278 = vld [vmem:[%s2 + $0x1c8] sm:$0xff]
      %v279 = vld [vmem:[%s2 + $0x1d0] sm:$0xff]
      %v280 = vld [vmem:[%s2 + $0x1d8] sm:$0xff]
      %v281 = vld [vmem:[%s2 + $0x1e0] sm:$0xff]
      %v282 = vld [vmem:[%s2 + $0x1e8] sm:$0xff]
      %v283 = vld [vmem:[%s2 + $0x1f0] sm:$0xff]
      %v284 = vld [vmem:[%s2 + $0x1f8] sm:$0xff]
      %v285 = vld [vmem:[%s2 + $0x200] sm:$0xff]
      %v286 = vld [vmem:[%s2 + $0x208] sm:$0xff]
      %v287 = vld [vmem:[%s2 + $0x210] sm:$0xff]
      %v288 = vld [vmem:[%s2 + $0x218] sm:$0xff]
      %v289 = vld [vmem:[%s2 + $0x220] sm:$0xff]
      %v290 = vld [vmem:[%s2 + $0x228] sm:$0xff]
      %v291 = vld [vmem:[%s2 + $0x230] sm:$0xff]
      %v292 = vld [vmem:[%s2 + $0x238] sm:$0xff]
      %v293 = vld [vmem:[%s2 + $0x240] sm:$0xff]
      %v294 = vld [vmem:[%s2 + $0x248] sm:$0xff]
      %v295 = vld [vmem:[%s2 + $0x250] sm:$0xff]
      %v296 = vld [vmem:[%s2 + $0x258] sm:$0xff]
      %v297 = vld [vmem:[%s212] sm:$0xff]
      %v298 = vld [vmem:[%s212 + $0x8] sm:$0xff]
      %v299 = vld [vmem:[%s212 + $0x10] sm:$0xff]
      %v300 = vld [vmem:[%s212 + $0x18] sm:$0xff]
      %v301 = vld [vmem:[%s212 + $0x20] sm:$0xff]
      %v302 = vld [vmem:[%s212 + $0x28] sm:$0xff]
      %v303 = vld [vmem:[%s212 + $0x30] sm:$0xff]
      %v304 = vld [vmem:[%s3] sm:$0xff]
      %v305 = vld [vmem:[%s3 + $0x8] sm:$0xff]
      %v306 = vld [vmem:[%s3 + $0x10] sm:$0xff]
      %v307 = vld [vmem:[%s3 + $0x18] sm:$0xff]
      %v308 = vld [vmem:[%s3 + $0x20] sm:$0xff]
      %v309 = vld [vmem:[%s3 + $0x28] sm:$0xff]
      %v310 = vld [vmem:[%s3 + $0x30] sm:$0xff]
      %v311 = vld [vmem:[%s3 + $0x38] sm:$0xff]
      %v312 = vld [vmem:[%s3 + $0x40] sm:$0xff]
      %v313 = vld [vmem:[%s3 + $0x48] sm:$0xff]
      %v314 = vld [vmem:[%s3 + $0x50] sm:$0xff]
      %v315 = vld [vmem:[%s3 + $0x58] sm:$0xff]
      %v316 = vld [vmem:[%s3 + $0x60] sm:$0xff]
      %v317 = vld [vmem:[%s3 + $0x68] sm:$0xff]
      %v318 = vld [vmem:[%s3 + $0x70] sm:$0xff]
      %v319 = vld [vmem:[%s3 + $0x78] sm:$0xff]
      %v320 = vld [vmem:[%s3 + $0x80] sm:$0xff]
      %v321 = vld [vmem:[%s3 + $0x88] sm:$0xff]
      %v322 = vld [vmem:[%s3 + $0x90] sm:$0xff]
      %v323 = vld [vmem:[%s3 + $0x98] sm:$0xff]
      %v324 = vld [vmem:[%s3 + $0xa0] sm:$0xff]
      %v325 = vld [vmem:[%s3 + $0xa8] sm:$0xff]
      %v326 = vld [vmem:[%s3 + $0xb0] sm:$0xff]
      %v327 = vld [vmem:[%s3 + $0xb8] sm:$0xff]
      %v328 = vld [vmem:[%s3 + $0xc0] sm:$0xff]
      %v329 = vld [vmem:[%s3 + $0xc8] sm:$0xff]
      %v330 = vld [vmem:[%s3 + $0xd0] sm:$0xff]
      %v331 = vld [vmem:[%s3 + $0xd8] sm:$0xff]
      %v332 = vld [vmem:[%s3 + $0xe0] sm:$0xff]
      %v333 = vld [vmem:[%s3 + $0xe8] sm:$0xff]
      %v334 = vld [vmem:[%s3 + $0xf0] sm:$0xff]
      %v335 = vld [vmem:[%s3 + $0xf8] sm:$0xff]
      %v336 = vld [vmem:[%s3 + $0x100] sm:$0xff]
      %v337 = vld [vmem:[%s3 + $0x108] sm:$0xff]
      %v338 = vld [vmem:[%s3 + $0x110] sm:$0xff]
      %v339 = vld [vmem:[%s3 + $0x118] sm:$0xff]
      %v340 = vld [vmem:[%s3 + $0x120] sm:$0xff]
      %v341 = vld [vmem:[%s3 + $0x128] sm:$0xff]
      %v342 = vld [vmem:[%s3 + $0x130] sm:$0xff]
      %v343 = vld [vmem:[%s3 + $0x138] sm:$0xff]
      %v344 = vld [vmem:[%s3 + $0x140] sm:$0xff]
      %v345 = vld [vmem:[%s3 + $0x148] sm:$0xff]
      %v346 = vld [vmem:[%s3 + $0x150] sm:$0xff]
      %v347 = vld [vmem:[%s3 + $0x158] sm:$0xff]
      %v348 = vld [vmem:[%s3 + $0x160] sm:$0xff]
      %v349 = vld [vmem:[%s3 + $0x168] sm:$0xff]
      %v350 = vld [vmem:[%s3 + $0x170] sm:$0xff]
      %v351 = vld [vmem:[%s3 + $0x178] sm:$0xff]
      %v352 = vld [vmem:[%s3 + $0x180] sm:$0xff]
      %v353 = vld [vmem:[%s3 + $0x188] sm:$0xff]
      %v354 = vld [vmem:[%s3 + $0x190] sm:$0xff]
      %v355 = vld [vmem:[%s3 + $0x198] sm:$0xff]
      %v356 = vld [vmem:[%s3 + $0x1a0] sm:$0xff]
      %v357 = vld [vmem:[%s3 + $0x1a8] sm:$0xff]
      %v358 = vld [vmem:[%s3 + $0x1b0] sm:$0xff]
      %v359 = vld [vmem:[%s3 + $0x1b8] sm:$0xff]
      %v360 = vld [vmem:[%s3 + $0x1c0] sm:$0xff]
      %v361 = vld [vmem:[%s3 + $0x1c8] sm:$0xff]
      %v362 = vld [vmem:[%s3 + $0x1d0] sm:$0xff]
      %v363 = vld [vmem:[%s3 + $0x1d8] sm:$0xff]
      %v364 = vld [vmem:[%s3 + $0x1e0] sm:$0xff]
      %v365 = vld [vmem:[%s3 + $0x1e8] sm:$0xff]
      %v366 = vld [vmem:[%s3 + $0x1f0] sm:$0xff]
      %v367 = vld [vmem:[%s3 + $0x1f8] sm:$0xff]
      %v368 = vld [vmem:[%s3 + $0x200] sm:$0xff]
      %v369 = vld [vmem:[%s3 + $0x208] sm:$0xff]
      %v370 = vld [vmem:[%s3 + $0x210] sm:$0xff]
      %v371 = vld [vmem:[%s3 + $0x218] sm:$0xff]
      %v372 = vld [vmem:[%s3 + $0x220] sm:$0xff]
      %v373 = vld [vmem:[%s3 + $0x228] sm:$0xff]
      %v374 = vld [vmem:[%s3 + $0x230] sm:$0xff]
      %v375 = vld [vmem:[%s3 + $0x238] sm:$0xff]
      %v376 = vld [vmem:[%s3 + $0x240] sm:$0xff]
      %v377 = vld [vmem:[%s3 + $0x248] sm:$0xff]
      %v378 = vld [vmem:[%s3 + $0x250] sm:$0xff]
      %v379 = vld [vmem:[%s3 + $0x258] sm:$0xff]
      %v380 = vld [vmem:[%s3 + $0x260] sm:$0xff]
      %v381 = vld [vmem:[%s3 + $0x268] sm:$0xff]
      %v382 = vld [vmem:[%s3 + $0x270] sm:$0xff]
      %v383 = vld [vmem:[%s3 + $0x278] sm:$0xff]
      %v384 = vld [vmem:[%s3 + $0x280] sm:$0xff]
      %v385 = vld [vmem:[%s3 + $0x288] sm:$0xff]
      %v386 = vld [vmem:[%s3 + $0x290] sm:$0xff]
      %v387 = vld [vmem:[%s3 + $0x298] sm:$0xff]
      %v388 = vld [vmem:[%s3 + $0x2a0] sm:$0xff]
      %v389 = vld [vmem:[%s3 + $0x2a8] sm:$0xff]
      %v390 = vld [vmem:[%s3 + $0x2b0] sm:$0xff]
      %v391 = vld [vmem:[%s3 + $0x2b8] sm:$0xff]
      %v392 = vld [vmem:[%s3 + $0x2c0] sm:$0xff]
      %v393 = vld [vmem:[%s3 + $0x2c8] sm:$0xff]
      %v394 = vld [vmem:[%s3 + $0x2d0] sm:$0xff]
      %v395 = vld [vmem:[%s3 + $0x2d8] sm:$0xff]
      %v396 = vld [vmem:[%s3 + $0x2e0] sm:$0xff]
      %v397 = vld [vmem:[%s3 + $0x2e8] sm:$0xff]
      %v398 = vld [vmem:[%s3 + $0x2f0] sm:$0xff]
      %v399 = vld [vmem:[%s3 + $0x2f8] sm:$0xff]
      %v400 = vld [vmem:[%s3 + $0x300] sm:$0xff]
      %v401 = vld [vmem:[%s3 + $0x308] sm:$0xff]
      %v402 = vld [vmem:[%s3 + $0x310] sm:$0xff]
      %v403 = vld [vmem:[%s3 + $0x318] sm:$0xff]
      %v404 = vld [vmem:[%s3 + $0x320] sm:$0xff]
      %v405 = vld [vmem:[%s3 + $0x328] sm:$0xff]
      %v406 = vld [vmem:[%s3 + $0x330] sm:$0xff]
      %v407 = vld [vmem:[%s3 + $0x338] sm:$0xff]
      %v408 = vld [vmem:[%s3 + $0x340] sm:$0xff]
      %v409 = vld [vmem:[%s3 + $0x348] sm:$0xff]
      %v410 = vld [vmem:[%s3 + $0x350] sm:$0xff]
      %v411 = vld [vmem:[%s3 + $0x358] sm:$0xff]
      %v412 = vld [vmem:[%s3 + $0x360] sm:$0xff]
      %v413 = vld [vmem:[%s3 + $0x368] sm:$0xff]
      %v414 = vld [vmem:[%s3 + $0x370] sm:$0xff]
      %v415 = vld [vmem:[%s3 + $0x378] sm:$0xff]
      %v416 = vld [vmem:[%s3 + $0x380] sm:$0xff]
      %v417 = vld [vmem:[%s3 + $0x388] sm:$0xff]
      %v418 = vld [vmem:[%s3 + $0x390] sm:$0xff]
      %v419 = vld [vmem:[%s3 + $0x398] sm:$0xff]
      %v420 = vld [vmem:[%s3 + $0x3a0] sm:$0xff]
      %v421 = vld [vmem:[%s3 + $0x3a8] sm:$0xff]
      %v422 = vld [vmem:[%s3 + $0x3b0] sm:$0xff]
      %v423 = vld [vmem:[%s3 + $0x3b8] sm:$0xff]
      %v424 = vld [vmem:[%s3 + $0x3c0] sm:$0xff]
      %v425 = vld [vmem:[%s3 + $0x3c8] sm:$0xff]
      %v426 = vld [vmem:[%s3 + $0x3d0] sm:$0xff]
      %v427 = vld [vmem:[%s3 + $0x3d8] sm:$0xff]
      %v428 = vld [vmem:[%s3 + $0x3e0] sm:$0xff]
      %v429 = vld [vmem:[%s3 + $0x3e8] sm:$0xff]
      %v430 = vld [vmem:[%s3 + $0x3f0] sm:$0xff]
      %v431 = vld [vmem:[%s3 + $0x3f8] sm:$0xff]
      %v432 = vld [vmem:[%s3 + $0x400] sm:$0xff]
      %v433 = vld [vmem:[%s3 + $0x408] sm:$0xff]
      %v434 = vld [vmem:[%s3 + $0x410] sm:$0xff]
      %v435 = vld [vmem:[%s3 + $0x418] sm:$0xff]
      %v436 = vld [vmem:[%s3 + $0x420] sm:$0xff]
      %v437 = vld [vmem:[%s3 + $0x428] sm:$0xff]
      %v438 = vld [vmem:[%s3 + $0x430] sm:$0xff]
      %v439 = vld [vmem:[%s3 + $0x438] sm:$0xff]
      %v440 = vld [vmem:[%s3 + $0x440] sm:$0xff]
      %v441 = vld [vmem:[%s3 + $0x448] sm:$0xff]
      %v442 = vld [vmem:[%s3 + $0x450] sm:$0xff]
      %v443 = vld [vmem:[%s3 + $0x458] sm:$0xff]
      %v444 = vld [vmem:[%s3 + $0x460] sm:$0xff]
      %v445 = vld [vmem:[%s3 + $0x468] sm:$0xff]
      %v446 = vld [vmem:[%s3 + $0x470] sm:$0xff]
      %v447 = vld [vmem:[%s3 + $0x478] sm:$0xff]
      %v448 = vld [vmem:[%s3 + $0x480] sm:$0xff]
      %v449 = vld [vmem:[%s3 + $0x488] sm:$0xff]
      %v450 = vld [vmem:[%s3 + $0x490] sm:$0xff]
      %v451 = vld [vmem:[%s3 + $0x498] sm:$0xff]
      %v452 = vld [vmem:[%s3 + $0x4a0] sm:$0xff]
      %v453 = vld [vmem:[%s3 + $0x4a8] sm:$0xff]
      %v454 = vld [vmem:[%s3 + $0x4b0] sm:$0xff]
      %v455 = vld [vmem:[%s3 + $0x4b8] sm:$0xff]
      %v456 = vld [vmem:[%s3 + $0x4c0] sm:$0xff]
      %v457 = vld [vmem:[%s3 + $0x4c8] sm:$0xff]
      %v458 = vld [vmem:[%s3 + $0x4d0] sm:$0xff]
      %v459 = vld [vmem:[%s3 + $0x4d8] sm:$0xff]
      %v460 = vld [vmem:[%s3 + $0x4e0] sm:$0xff]
      %v461 = vld [vmem:[%s3 + $0x4e8] sm:$0xff]
      %v462 = vld [vmem:[%s3 + $0x4f0] sm:$0xff]
      %v463 = vld [vmem:[%s3 + $0x4f8] sm:$0xff]
      %v464 = vld [vmem:[%s3 + $0x500] sm:$0xff]
      %v465 = vld [vmem:[%s3 + $0x508] sm:$0xff]
      %v466 = vld [vmem:[%s3 + $0x510] sm:$0xff]
      %v467 = vld [vmem:[%s3 + $0x518] sm:$0xff]
      %v468 = vld [vmem:[%s3 + $0x520] sm:$0xff]
      %v469 = vld [vmem:[%s3 + $0x528] sm:$0xff]
      %v470 = vld [vmem:[%s3 + $0x530] sm:$0xff]
      %v471 = vld [vmem:[%s3 + $0x538] sm:$0xff]
      %v472 = vld [vmem:[%s3 + $0x540] sm:$0xff]
      %v473 = vld [vmem:[%s3 + $0x548] sm:$0xff]
      %v474 = vld [vmem:[%s3 + $0x550] sm:$0xff]
      %v475 = vld [vmem:[%s3 + $0x558] sm:$0xff]
      %v476 = vld [vmem:[%s3 + $0x560] sm:$0xff]
      %v477 = vld [vmem:[%s3 + $0x568] sm:$0xff]
      %v478 = vld [vmem:[%s3 + $0x570] sm:$0xff]
      %v479 = vld [vmem:[%s3 + $0x578] sm:$0xff]
      %v480 = vld [vmem:[%s3 + $0x580] sm:$0xff]
      %v481 = vld [vmem:[%s3 + $0x588] sm:$0xff]
      %v482 = vld [vmem:[%s3 + $0x590] sm:$0xff]
      %v483 = vld [vmem:[%s3 + $0x598] sm:$0xff]
      %v484 = vld [vmem:[%s3 + $0x5a0] sm:$0xff]
      %v485 = vld [vmem:[%s3 + $0x5a8] sm:$0xff]
      %v486 = vld [vmem:[%s3 + $0x5b0] sm:$0xff]
      %v487 = vld [vmem:[%s3 + $0x5b8] sm:$0xff]
      %v488 = vld [vmem:[%s3 + $0x5c0] sm:$0xff]
      %v489 = vld [vmem:[%s3 + $0x5c8] sm:$0xff]
      %v490 = vld [vmem:[%s3 + $0x5d0] sm:$0xff]
      %v491 = vld [vmem:[%s3 + $0x5d8] sm:$0xff]
      %v492 = vld [vmem:[%s3 + $0x5e0] sm:$0xff]
      %v493 = vld [vmem:[%s3 + $0x5e8] sm:$0xff]
      %v494 = vld [vmem:[%s3 + $0x5f0] sm:$0xff]
      %v495 = vld [vmem:[%s3 + $0x5f8] sm:$0xff]
      %v496 = vld [vmem:[%s3 + $0x600] sm:$0xff]
      %v497 = vld [vmem:[%s3 + $0x608] sm:$0xff]
      %v498 = vld [vmem:[%s3 + $0x610] sm:$0xff]
      %v499 = vld [vmem:[%s3 + $0x618] sm:$0xff]
      %v500 = vld [vmem:[%s3 + $0x620] sm:$0xff]
      %v501 = vld [vmem:[%s3 + $0x628] sm:$0xff]
      %v502 = vld [vmem:[%s3 + $0x630] sm:$0xff]
      %v503 = vld [vmem:[%s3 + $0x638] sm:$0xff]
      %v504 = vld [vmem:[%s3 + $0x640] sm:$0xff]
      %v505 = vld [vmem:[%s3 + $0x648] sm:$0xff]
      %v506 = vld [vmem:[%s3 + $0x650] sm:$0xff]
      %v507 = vld [vmem:[%s3 + $0x658] sm:$0xff]
      %v508 = vld [vmem:[%s3 + $0x660] sm:$0xff]
      %v509 = vld [vmem:[%s3 + $0x668] sm:$0xff]
      %v510 = vld [vmem:[%s3 + $0x670] sm:$0xff]
      %v511 = vld [vmem:[%s3 + $0x678] sm:$0xff]
      %v512 = vld [vmem:[%s3 + $0x680] sm:$0xff]
      %v513 = vld [vmem:[%s3 + $0x688] sm:$0xff]
      %v514 = vld [vmem:[%s3 + $0x690] sm:$0xff]
      %v515 = vld [vmem:[%s3 + $0x698] sm:$0xff]
      %v516 = vld [vmem:[%s3 + $0x6a0] sm:$0xff]
      %v517 = vld [vmem:[%s3 + $0x6a8] sm:$0xff]
      %v518 = vld [vmem:[%s3 + $0x6b0] sm:$0xff]
      %v519 = vld [vmem:[%s3 + $0x6b8] sm:$0xff]
      %v520 = vld [vmem:[%s3 + $0x6c0] sm:$0xff]
      %v521 = vld [vmem:[%s3 + $0x6c8] sm:$0xff]
      %v522 = vld [vmem:[%s3 + $0x6d0] sm:$0xff]
      %v523 = vld [vmem:[%s3 + $0x6d8] sm:$0xff]
      %vm524 = vcmask 916480
      %v526 = vsel %vm524, %v303, 0
      %528 = vmatprep.subr.mxu0 %v335
      %529 = vmatpush1.msra.mxu0 %v334
      %530 = vmatprep.subr.mxu0 %v333
      %531 = vmatpush1.msra.mxu0 %v332
      %532 = vmatprep.subr.mxu0 %v331
      %533 = vmatpush1.msra.mxu0 %v330
      %534 = vmatprep.subr.mxu0 %v329
      %535 = vmatpush1.msra.mxu0 %v328
      %536 = vmatprep.subr.mxu0 %v327
      %537 = vmatpush1.msra.mxu0 %v326
      %538 = vmatprep.subr.mxu0 %v325
      %539 = vmatpush1.msra.mxu0 %v324
      %540 = vmatprep.subr.mxu0 %v323
      %541 = vmatpush1.msra.mxu0 %v322
      %542 = vmatprep.subr.mxu0 %v321
      %543 = vmatpush1.msra.mxu0 %v320
      %544 = vmatprep.subr.mxu0 %v319
      %545 = vmatpush1.msra.mxu0 %v318
      %546 = vmatprep.subr.mxu0 %v317
      %547 = vmatpush1.msra.mxu0 %v316
      %548 = vmatprep.subr.mxu0 %v315
      %549 = vmatpush1.msra.mxu0 %v314
      %550 = vmatprep.subr.mxu0 %v313
      %551 = vmatpush1.msra.mxu0 %v312
      %552 = vmatprep.subr.mxu0 %v311
      %553 = vmatpush1.msra.mxu0 %v310
      %554 = vmatprep.subr.mxu0 %v309
      %555 = vmatpush1.msra.mxu0 %v308
      %556 = vmatprep.subr.mxu0 %v307
      %557 = vmatpush1.msra.mxu0 %v306
      %558 = vmatprep.subr.mxu0 %v305
      %559 = vmatpush1.msra.mxu0 %v304
      %560 = vmatprep.subr.mxu0 %v367
      %561 = vmatpush2.msra.mxu0 %v366
      %562 = vmatprep.subr.mxu0 %v365
      %563 = vmatpush2.msra.mxu0 %v364
      %564 = vmatprep.subr.mxu0 %v363
      %565 = vmatpush2.msra.mxu0 %v362
      %566 = vmatprep.subr.mxu0 %v361
      %567 = vmatpush2.msra.mxu0 %v360
      %568 = vmatprep.subr.mxu0 %v359
      %569 = vmatpush2.msra.mxu0 %v358
      %570 = vmatprep.subr.mxu0 %v357
      %571 = vmatpush2.msra.mxu0 %v356
      %572 = vmatprep.subr.mxu0 %v355
      %573 = vmatpush2.msra.mxu0 %v354
      %574 = vmatprep.subr.mxu0 %v353
      %575 = vmatpush2.msra.mxu0 %v352
      %576 = vmatprep.subr.mxu0 %v351
      %577 = vmatpush2.msra.mxu0 %v350
      %578 = vmatprep.subr.mxu0 %v349
      %579 = vmatpush2.msra.mxu0 %v348
      %580 = vmatprep.subr.mxu0 %v347
      %581 = vmatpush2.msra.mxu0 %v346
      %582 = vmatprep.subr.mxu0 %v345
      %583 = vmatpush2.msra.mxu0 %v344
      %584 = vmatprep.subr.mxu0 %v343
      %585 = vmatpush2.msra.mxu0 %v342
      %586 = vmatprep.subr.mxu0 %v341
      %587 = vmatpush2.msra.mxu0 %v340
      %588 = vmatprep.subr.mxu0 %v339
      %589 = vmatpush2.msra.mxu0 %v338
      %590 = vmatprep.subr.mxu0 %v337
      %591 = vmatpush2.msra.mxu0 %v336
      %592 = vmatprep.mubr.f32.mxu0 %v298
      %593 = vmatmul.mubr.f32.gmra.mxu0 %v297
      %v594 = vpop.f32.mrf.mxu0
      %v595 = vadd.f32 0.0, %v594
      %v596 = vpop.f32.mrf.mxu0
      %v597 = vadd.f32 0.0, %v596
      %598 = vdwg.mxu0
      %599 = vmatprep.subr.mxu0 %v399
      %600 = vmatpush1.msra.mxu0 %v398
      %601 = vmatprep.subr.mxu0 %v397
      %602 = vmatpush1.msra.mxu0 %v396
      %603 = vmatprep.subr.mxu0 %v395
      %604 = vmatpush1.msra.mxu0 %v394
      %605 = vmatprep.subr.mxu0 %v393
      %606 = vmatpush1.msra.mxu0 %v392
      %607 = vmatprep.subr.mxu0 %v391
      %608 = vmatpush1.msra.mxu0 %v390
      %609 = vmatprep.subr.mxu0 %v389
      %610 = vmatpush1.msra.mxu0 %v388
      %611 = vmatprep.subr.mxu0 %v387
      %612 = vmatpush1.msra.mxu0 %v386
      %613 = vmatprep.subr.mxu0 %v385
      %614 = vmatpush1.msra.mxu0 %v384
      %615 = vmatprep.subr.mxu0 %v383
      %616 = vmatpush1.msra.mxu0 %v382
      %617 = vmatprep.subr.mxu0 %v381
      %618 = vmatpush1.msra.mxu0 %v380
      %619 = vmatprep.subr.mxu0 %v379
      %620 = vmatpush1.msra.mxu0 %v378
      %621 = vmatprep.subr.mxu0 %v377
      %622 = vmatpush1.msra.mxu0 %v376
      %623 = vmatprep.subr.mxu0 %v375
      %624 = vmatpush1.msra.mxu0 %v374
      %625 = vmatprep.subr.mxu0 %v373
      %626 = vmatpush1.msra.mxu0 %v372
      %627 = vmatprep.subr.mxu0 %v371
      %628 = vmatpush1.msra.mxu0 %v370
      %629 = vmatprep.subr.mxu0 %v369
      %630 = vmatpush1.msra.mxu0 %v368
      %631 = vmatprep.subr.mxu0 %v431
      %632 = vmatpush2.msra.mxu0 %v430
      %633 = vmatprep.subr.mxu0 %v429
      %634 = vmatpush2.msra.mxu0 %v428
      %635 = vmatprep.subr.mxu0 %v427
      %636 = vmatpush2.msra.mxu0 %v426
      %637 = vmatprep.subr.mxu0 %v425
      %638 = vmatpush2.msra.mxu0 %v424
      %639 = vmatprep.subr.mxu0 %v423
      %640 = vmatpush2.msra.mxu0 %v422
      %641 = vmatprep.subr.mxu0 %v421
      %642 = vmatpush2.msra.mxu0 %v420
      %643 = vmatprep.subr.mxu0 %v419
      %644 = vmatpush2.msra.mxu0 %v418
      %645 = vmatprep.subr.mxu0 %v417
      %646 = vmatpush2.msra.mxu0 %v416
      %647 = vmatprep.subr.mxu0 %v415
      %648 = vmatpush2.msra.mxu0 %v414
      %649 = vmatprep.subr.mxu0 %v413
      %650 = vmatpush2.msra.mxu0 %v412
      %651 = vmatprep.subr.mxu0 %v411
      %652 = vmatpush2.msra.mxu0 %v410
      %653 = vmatprep.subr.mxu0 %v409
      %654 = vmatpush2.msra.mxu0 %v408
      %655 = vmatprep.subr.mxu0 %v407
      %656 = vmatpush2.msra.mxu0 %v406
      %657 = vmatprep.subr.mxu0 %v405
      %658 = vmatpush2.msra.mxu0 %v404
      %659 = vmatprep.subr.mxu0 %v403
      %660 = vmatpush2.msra.mxu0 %v402
      %661 = vmatprep.subr.mxu0 %v401
      %662 = vmatpush2.msra.mxu0 %v400
      %663 = vmatprep.mubr.f32.mxu0 %v300
      %664 = vmatmul.mubr.f32.gmra.mxu0 %v299
      %v665 = vpop.f32.mrf.mxu0
      %v666 = vadd.f32 %v595, %v665
      %v667 = vpop.f32.mrf.mxu0
      %v668 = vadd.f32 %v597, %v667
      %669 = vdwg.mxu0
      %670 = vmatprep.subr.mxu0 %v463
      %671 = vmatpush1.msra.mxu0 %v462
      %672 = vmatprep.subr.mxu0 %v461
      %673 = vmatpush1.msra.mxu0 %v460
      %674 = vmatprep.subr.mxu0 %v459
      %675 = vmatpush1.msra.mxu0 %v458
      %676 = vmatprep.subr.mxu0 %v457
      %677 = vmatpush1.msra.mxu0 %v456
      %678 = vmatprep.subr.mxu0 %v455
      %679 = vmatpush1.msra.mxu0 %v454
      %680 = vmatprep.subr.mxu0 %v453
      %681 = vmatpush1.msra.mxu0 %v452
      %682 = vmatprep.subr.mxu0 %v451
      %683 = vmatpush1.msra.mxu0 %v450
      %684 = vmatprep.subr.mxu0 %v449
      %685 = vmatpush1.msra.mxu0 %v448
      %686 = vmatprep.subr.mxu0 %v447
      %687 = vmatpush1.msra.mxu0 %v446
      %688 = vmatprep.subr.mxu0 %v445
      %689 = vmatpush1.msra.mxu0 %v444
      %690 = vmatprep.subr.mxu0 %v443
      %691 = vmatpush1.msra.mxu0 %v442
      %692 = vmatprep.subr.mxu0 %v441
      %693 = vmatpush1.msra.mxu0 %v440
      %694 = vmatprep.subr.mxu0 %v439
      %695 = vmatpush1.msra.mxu0 %v438
      %696 = vmatprep.subr.mxu0 %v437
      %697 = vmatpush1.msra.mxu0 %v436
      %698 = vmatprep.subr.mxu0 %v435
      %699 = vmatpush1.msra.mxu0 %v434
      %700 = vmatprep.subr.mxu0 %v433
      %701 = vmatpush1.msra.mxu0 %v432
      %702 = vmatprep.subr.mxu0 %v495
      %703 = vmatpush2.msra.mxu0 %v494
      %704 = vmatprep.subr.mxu0 %v493
      %705 = vmatpush2.msra.mxu0 %v492
      %706 = vmatprep.subr.mxu0 %v491
      %707 = vmatpush2.msra.mxu0 %v490
      %708 = vmatprep.subr.mxu0 %v489
      %709 = vmatpush2.msra.mxu0 %v488
      %710 = vmatprep.subr.mxu0 %v487
      %711 = vmatpush2.msra.mxu0 %v486
      %712 = vmatprep.subr.mxu0 %v485
      %713 = vmatpush2.msra.mxu0 %v484
      %714 = vmatprep.subr.mxu0 %v483
      %715 = vmatpush2.msra.mxu0 %v482
      %716 = vmatprep.subr.mxu0 %v481
      %717 = vmatpush2.msra.mxu0 %v480
      %718 = vmatprep.subr.mxu0 %v479
      %719 = vmatpush2.msra.mxu0 %v478
      %720 = vmatprep.subr.mxu0 %v477
      %721 = vmatpush2.msra.mxu0 %v476
      %722 = vmatprep.subr.mxu0 %v475
      %723 = vmatpush2.msra.mxu0 %v474
      %724 = vmatprep.subr.mxu0 %v473
      %725 = vmatpush2.msra.mxu0 %v472
      %726 = vmatprep.subr.mxu0 %v471
      %727 = vmatpush2.msra.mxu0 %v470
      %728 = vmatprep.subr.mxu0 %v469
      %729 = vmatpush2.msra.mxu0 %v468
      %730 = vmatprep.subr.mxu0 %v467
      %731 = vmatpush2.msra.mxu0 %v466
      %732 = vmatprep.subr.mxu0 %v465
      %733 = vmatpush2.msra.mxu0 %v464
      %734 = vmatprep.mubr.f32.mxu0 %v302
      %735 = vmatmul.mubr.f32.gmra.mxu0 %v301
      %v736 = vpop.f32.mrf.mxu0
      %v737 = vadd.f32 %v666, %v736
      %v738 = vpop.f32.mrf.mxu0
      %v739 = vadd.f32 %v668, %v738
      %740 = vdwg.mxu0
      %741 = vmatprep.subr.mxu0 0.0
      %742 = vmatpush1.msra.mxu0 0.0
      %743 = vmatprep.subr.mxu0 0.0
      %744 = vmatpush1.msra.mxu0 0.0
      %745 = vmatprep.subr.mxu0 %v523
      %746 = vmatpush1.msra.mxu0 %v522
      %747 = vmatprep.subr.mxu0 %v521
      %748 = vmatpush1.msra.mxu0 %v520
      %749 = vmatprep.subr.mxu0 %v519
      %750 = vmatpush1.msra.mxu0 %v518
      %751 = vmatprep.subr.mxu0 %v517
      %752 = vmatpush1.msra.mxu0 %v516
      %753 = vmatprep.subr.mxu0 %v515
      %754 = vmatpush1.msra.mxu0 %v514
      %755 = vmatprep.subr.mxu0 %v513
      %756 = vmatpush1.msra.mxu0 %v512
      %757 = vmatprep.subr.mxu0 %v511
      %758 = vmatpush1.msra.mxu0 %v510
      %759 = vmatprep.subr.mxu0 %v509
      %760 = vmatpush1.msra.mxu0 %v508
      %761 = vmatprep.subr.mxu0 %v507
      %762 = vmatpush1.msra.mxu0 %v506
      %763 = vmatprep.subr.mxu0 %v505
      %764 = vmatpush1.msra.mxu0 %v504
      %765 = vmatprep.subr.mxu0 %v503
      %766 = vmatpush1.msra.mxu0 %v502
      %767 = vmatprep.subr.mxu0 %v501
      %768 = vmatpush1.msra.mxu0 %v500
      %769 = vmatprep.subr.mxu0 %v499
      %770 = vmatpush1.msra.mxu0 %v498
      %771 = vmatprep.subr.mxu0 %v497
      %772 = vmatpush1.msra.mxu0 %v496
      %773 = vmatprep.subr.mxu0 0.0
      %774 = vmatpush2.msra.mxu0 0.0
      %775 = vmatprep.subr.mxu0 0.0
      %776 = vmatpush2.msra.mxu0 0.0
      %777 = vmatprep.subr.mxu0 0.0
      %778 = vmatpush2.msra.mxu0 0.0
      %779 = vmatprep.subr.mxu0 0.0
      %780 = vmatpush2.msra.mxu0 0.0
      %781 = vmatprep.subr.mxu0 0.0
      %782 = vmatpush2.msra.mxu0 0.0
      %783 = vmatprep.subr.mxu0 0.0
      %784 = vmatpush2.msra.mxu0 0.0
      %785 = vmatprep.subr.mxu0 0.0
      %786 = vmatpush2.msra.mxu0 0.0
      %787 = vmatprep.subr.mxu0 0.0
      %788 = vmatpush2.msra.mxu0 0.0
      %789 = vmatprep.subr.mxu0 0.0
      %790 = vmatpush2.msra.mxu0 0.0
      %791 = vmatprep.subr.mxu0 0.0
      %792 = vmatpush2.msra.mxu0 0.0
      %793 = vmatprep.subr.mxu0 0.0
      %794 = vmatpush2.msra.mxu0 0.0
      %795 = vmatprep.subr.mxu0 0.0
      %796 = vmatpush2.msra.mxu0 0.0
      %797 = vmatprep.subr.mxu0 0.0
      %798 = vmatpush2.msra.mxu0 0.0
      %799 = vmatprep.subr.mxu0 0.0
      %800 = vmatpush2.msra.mxu0 0.0
      %801 = vmatprep.subr.mxu0 0.0
      %802 = vmatpush2.msra.mxu0 0.0
      %803 = vmatprep.subr.mxu0 0.0
      %804 = vmatpush2.msra.mxu0 0.0
      %805 = vmatprep.mubr.f32.mxu0 0.0
      %806 = vmatmul.mubr.f32.gmra.mxu0 %v526
      %v807 = vpop.f32.mrf.mxu0
      %v808 = vadd.f32 %v737, %v807
      %v809 = vpop.f32.mrf.mxu0
      %v810 = vadd.f32 %v739, %v809
      %811 = vdwg.mxu0
      %vm812 = vcmask 392192
      %v814 = vsel %vm812, %v220, 0
      %816 = vmatprep.subr.mxu0 %v252
      %817 = vmatpush1.msra.mxu0 %v251
      %818 = vmatprep.subr.mxu0 %v250
      %819 = vmatpush1.msra.mxu0 %v249
      %820 = vmatprep.subr.mxu0 %v248
      %821 = vmatpush1.msra.mxu0 %v247
      %822 = vmatprep.subr.mxu0 %v246
      %823 = vmatpush1.msra.mxu0 %v245
      %824 = vmatprep.subr.mxu0 %v244
      %825 = vmatpush1.msra.mxu0 %v243
      %826 = vmatprep.subr.mxu0 %v242
      %827 = vmatpush1.msra.mxu0 %v241
      %828 = vmatprep.subr.mxu0 %v240
      %829 = vmatpush1.msra.mxu0 %v239
      %830 = vmatprep.subr.mxu0 %v238
      %831 = vmatpush1.msra.mxu0 %v237
      %832 = vmatprep.subr.mxu0 %v236
      %833 = vmatpush1.msra.mxu0 %v235
      %834 = vmatprep.subr.mxu0 %v234
      %835 = vmatpush1.msra.mxu0 %v233
      %836 = vmatprep.subr.mxu0 %v232
      %837 = vmatpush1.msra.mxu0 %v231
      %838 = vmatprep.subr.mxu0 %v230
      %839 = vmatpush1.msra.mxu0 %v229
      %840 = vmatprep.subr.mxu0 %v228
      %841 = vmatpush1.msra.mxu0 %v227
      %842 = vmatprep.subr.mxu0 %v226
      %843 = vmatpush1.msra.mxu0 %v225
      %844 = vmatprep.subr.mxu0 %v224
      %845 = vmatpush1.msra.mxu0 %v223
      %846 = vmatprep.subr.mxu0 %v222
      %847 = vmatpush1.msra.mxu0 %v221
      %848 = vmatprep.subr.mxu0 %v284
      %849 = vmatpush2.msra.mxu0 %v283
      %850 = vmatprep.subr.mxu0 %v282
      %851 = vmatpush2.msra.mxu0 %v281
      %852 = vmatprep.subr.mxu0 %v280
      %853 = vmatpush2.msra.mxu0 %v279
      %854 = vmatprep.subr.mxu0 %v278
      %855 = vmatpush2.msra.mxu0 %v277
      %856 = vmatprep.subr.mxu0 %v276
      %857 = vmatpush2.msra.mxu0 %v275
      %858 = vmatprep.subr.mxu0 %v274
      %859 = vmatpush2.msra.mxu0 %v273
      %860 = vmatprep.subr.mxu0 %v272
      %861 = vmatpush2.msra.mxu0 %v271
      %862 = vmatprep.subr.mxu0 %v270
      %863 = vmatpush2.msra.mxu0 %v269
      %864 = vmatprep.subr.mxu0 %v268
      %865 = vmatpush2.msra.mxu0 %v267
      %866 = vmatprep.subr.mxu0 %v266
      %867 = vmatpush2.msra.mxu0 %v265
      %868 = vmatprep.subr.mxu0 %v264
      %869 = vmatpush2.msra.mxu0 %v263
      %870 = vmatprep.subr.mxu0 %v262
      %871 = vmatpush2.msra.mxu0 %v261
      %872 = vmatprep.subr.mxu0 %v260
      %873 = vmatpush2.msra.mxu0 %v259
      %874 = vmatprep.subr.mxu0 %v258
      %875 = vmatpush2.msra.mxu0 %v257
      %876 = vmatprep.subr.mxu0 %v256
      %877 = vmatpush2.msra.mxu0 %v255
      %878 = vmatprep.subr.mxu0 %v254
      %879 = vmatpush2.msra.mxu0 %v253
      %880 = vmatprep.mubr.f32.mxu0 %v219
      %881 = vmatmul.mubr.f32.gmra.mxu0 %v218
      %v882 = vpop.f32.mrf.mxu0
      %v883 = vadd.f32 %v808, %v882
      %v884 = vpop.f32.mrf.mxu0
      %v885 = vadd.f32 %v810, %v884
      %886 = vdwg.mxu0
      %887 = vmatprep.subr.mxu0 0.0
      %888 = vmatpush1.msra.mxu0 0.0
      %889 = vmatprep.subr.mxu0 0.0
      %890 = vmatpush1.msra.mxu0 0.0
      %891 = vmatprep.subr.mxu0 0.0
      %892 = vmatpush1.msra.mxu0 0.0
      %893 = vmatprep.subr.mxu0 0.0
      %894 = vmatpush1.msra.mxu0 0.0
      %895 = vmatprep.subr.mxu0 0.0
      %896 = vmatpush1.msra.mxu0 0.0
      %897 = vmatprep.subr.mxu0 0.0
      %898 = vmatpush1.msra.mxu0 0.0
      %899 = vmatprep.subr.mxu0 0.0
      %900 = vmatpush1.msra.mxu0 0.0
      %901 = vmatprep.subr.mxu0 0.0
      %902 = vmatpush1.msra.mxu0 0.0
      %903 = vmatprep.subr.mxu0 0.0
      %904 = vmatpush1.msra.mxu0 0.0
      %905 = vmatprep.subr.mxu0 0.0
      %906 = vmatpush1.msra.mxu0 0.0
      %907 = vmatprep.subr.mxu0 %v296
      %908 = vmatpush1.msra.mxu0 %v295
      %909 = vmatprep.subr.mxu0 %v294
      %910 = vmatpush1.msra.mxu0 %v293
      %911 = vmatprep.subr.mxu0 %v292
      %912 = vmatpush1.msra.mxu0 %v291
      %913 = vmatprep.subr.mxu0 %v290
      %914 = vmatpush1.msra.mxu0 %v289
      %915 = vmatprep.subr.mxu0 %v288
      %916 = vmatpush1.msra.mxu0 %v287
      %917 = vmatprep.subr.mxu0 %v286
      %918 = vmatpush1.msra.mxu0 %v285
      %919 = vmatprep.subr.mxu0 0.0
      %920 = vmatpush2.msra.mxu0 0.0
      %921 = vmatprep.subr.mxu0 0.0
      %922 = vmatpush2.msra.mxu0 0.0
      %923 = vmatprep.subr.mxu0 0.0
      %924 = vmatpush2.msra.mxu0 0.0
      %925 = vmatprep.subr.mxu0 0.0
      %926 = vmatpush2.msra.mxu0 0.0
      %927 = vmatprep.subr.mxu0 0.0
      %928 = vmatpush2.msra.mxu0 0.0
      %929 = vmatprep.subr.mxu0 0.0
      %930 = vmatpush2.msra.mxu0 0.0
      %931 = vmatprep.subr.mxu0 0.0
      %932 = vmatpush2.msra.mxu0 0.0
      %933 = vmatprep.subr.mxu0 0.0
      %934 = vmatpush2.msra.mxu0 0.0
      %935 = vmatprep.subr.mxu0 0.0
      %936 = vmatpush2.msra.mxu0 0.0
      %937 = vmatprep.subr.mxu0 0.0
      %938 = vmatpush2.msra.mxu0 0.0
      %939 = vmatprep.subr.mxu0 0.0
      %940 = vmatpush2.msra.mxu0 0.0
      %941 = vmatprep.subr.mxu0 0.0
      %942 = vmatpush2.msra.mxu0 0.0
      %943 = vmatprep.subr.mxu0 0.0
      %944 = vmatpush2.msra.mxu0 0.0
      %945 = vmatprep.subr.mxu0 0.0
      %946 = vmatpush2.msra.mxu0 0.0
      %947 = vmatprep.subr.mxu0 0.0
      %948 = vmatpush2.msra.mxu0 0.0
      %949 = vmatprep.subr.mxu0 0.0
      %950 = vmatpush2.msra.mxu0 0.0
      %951 = vmatprep.mubr.f32.mxu0 0.0
      %952 = vmatmul.mubr.f32.gmra.mxu0 %v814
      %v953 = vpop.f32.mrf.mxu0
      %v954 = vadd.f32 %v883, %v953
      %v955 = vpop.f32.mrf.mxu0
      %v956 = vadd.f32 %v885, %v955
      %957 = vdwg.mxu0
      %958 = vst [vmem:[%s217] sm:$0xff] %v954
      %959 = vst [vmem:[%s217 + $0x8] sm:$0xff] %v956
      %p960 = scmp.lt.s32.totalorder %s15, 1
      %s961 = scalar_select %p960, %s15, 1
      %s962 = smul.addr %s961, 2
      %s963 = smul.addr %s962, 8
      %s964 = scalar_lea.vmem %s4, %s963
      // Predicated region
      $region37: #{blt_conv_forward.1} parent=35 // pred_check
        %p965 = pneg %p127
      $region38: #{blt_conv_forward.1} parent=35 // pred_check_branch
        %967 = sbr.rel (%p965) target = $region40
      $region39: #{blt_conv_forward.1} parent=35 // pred_region
        _
      $region40: #{blt_conv_forward.1} parent=35 // pred_fallthru
        _
    $region36: #{blt_conv_forward.1} parent=5 // pred_fallthru
      _
    %p968 = scmp.le.s32.totalorder 2, %s10
    // Predicated region
    $region41: #{blt_conv_forward.1} parent=5 // pred_check
      %p969 = pneg %p968
    $region42: #{blt_conv_forward.1} parent=5 // pred_check_branch
      %971 = sbr.rel (%p969) target = $region44
    $region43: #{blt_conv_forward.1} parent=5 // pred_region
      %s972 = ssub.s32 %s10, 2
      // Predicated region
      $region45: #{blt_conv_forward.1} parent=43 // pred_check
        %p973 = pneg %p133
      $region46: #{blt_conv_forward.1} parent=43 // pred_check_branch
        %975 = sbr.rel (%p973) target = $region48
      $region47: #{blt_conv_forward.1} parent=43 // pred_region
        %p976 = scmp.lt.s32.totalorder %s16, 1
        %s977 = scalar_select %p976, %s16, 1
        %s978 = smul.addr %s977, 2
        %s979 = smul.addr %s978, 8
        %s980 = scalar_lea.vmem %s4, %s979
      $region48: #{blt_conv_forward.1} parent=43 // pred_fallthru
        _
    $region44: #{blt_conv_forward.1} parent=5 // pred_fallthru
      _
  $region6: #{blt_conv_forward.1} parent=0 // loop_footer
    %s14 = sadd.s32 1, %s10
  $region7: #{blt_conv_forward.1} parent=0 // loop_footer_branch
    %9 = sbr.rel target = $region3
  $region8: #{blt_conv_forward.1} parent=0 // loop_exit
    _

</llo_original>
